<compile_context>
chip_gen: v7x
topology: tpu7x:2x2x1
jax: 0.10.0
libtpu: 0.0.40
codegen_flags: <defaults>
</compile_context>

<pallas_src>
import math
import jax
import jax.numpy as jnp
from jax.experimental import pallas as pl
from jax.experimental.pallas import tpu as pltpu


def _projection_kernel(x_ref, w1_ref, b1_ref, w2_ref, b2_ref, wfc_ref, bfc_ref,
                       xn_ref, score_ref):
    x = x_ref[...]                                                   # (TB, in_dim)

    # hidden Linear + ReLU (MXU matmul, VPU max)
    h = jnp.dot(x, w1_ref[...], preferred_element_type=jnp.float32) + b1_ref[...]
    h = jnp.maximum(h, 0.0)                                          # (TB, 256)

    # out Linear (MXU)
    z = jnp.dot(h, w2_ref[...], preferred_element_type=jnp.float32) + b2_ref[...]

    # F.normalize(p=2, dim=1): z / max(||z||, 1e-12) == z * rsqrt(max(||z||^2, 1e-24))
    sq = jnp.sum(z * z, axis=1, keepdims=True)                       # (TB, 1) XLU reduce
    inv = jax.lax.rsqrt(jnp.maximum(sq, 1e-24))                      # EUP rsqrt
    xn = z * inv                                                     # (TB, D_out)

    # fc Linear (D_out -> 1) + sigmoid, without a degenerate N=1 MXU matmul:
    #   xn @ w_fc + b_fc == (sum_j z_j * wfc_j) * inv + b_fc
    dot_zw = jnp.sum(z * wfc_ref[...], axis=1, keepdims=True)        # (TB, 1) XLU reduce
    logit = dot_zw * inv + bfc_ref[...]
    score = jax.nn.sigmoid(logit)                                    # exact, f32 (EUP exp)

    xn_ref[...] = xn.astype(xn_ref.dtype)
    score_ref[...] = score.astype(score_ref.dtype)


def projection_head_with_bce(x, params, *, block_batch=256):
    """x: (B, in_dim) float32. params: dict of weights / biases (see init_params)."""
    B, in_dim = x.shape
    hid = params["w_hidden_t"].shape[1]
    d_out = params["w_out_t"].shape[1]

    # Batch tile: multiple of 8 (f32 sublane), capped by block_batch, and the
    # padded batch is a multiple of the tile so every block is full-sized.
    tb = min(block_batch, 8 * pl.cdiv(B, 8))
    tb = 8 * pl.cdiv(tb, 8)
    bp = tb * pl.cdiv(B, tb)
    if bp != B:
        # Zero padding is safe: padded rows flow through the whole pipeline
        # without producing NaN/Inf (norm clamps at 1e-12) and are sliced off.
        x = jnp.pad(x, ((0, bp - B), (0, 0)))
    grid = (bp // tb,)

    flops = 2 * bp * (in_dim * hid + hid * d_out + d_out)
    transcendentals = 2 * bp                                   # rsqrt + sigmoid per row
    bytes_accessed = 4 * (bp * (in_dim + d_out + 1)
                          + in_dim * hid + hid * d_out
                          + hid + 2 * d_out + 1)

    xn, score = pl.pallas_call(
        _projection_kernel,
        out_shape=(
            jax.ShapeDtypeStruct((bp, d_out), jnp.float32),
            jax.ShapeDtypeStruct((bp, 1), jnp.float32),
        ),
        grid=grid,
        in_specs=[
            # activations: blocked over the batch (double-buffered by Pallas)
            pl.BlockSpec((tb, in_dim), lambda i: (i, 0)),
            # weights / biases: constant index_map -> VMEM-resident across steps
            pl.BlockSpec((in_dim, hid), lambda i: (0, 0)),
            pl.BlockSpec((1, hid), lambda i: (0, 0)),
            pl.BlockSpec((hid, d_out), lambda i: (0, 0)),
            pl.BlockSpec((1, d_out), lambda i: (0, 0)),
            pl.BlockSpec((1, d_out), lambda i: (0, 0)),   # w_fc as a row
            pl.BlockSpec((1, 1), lambda i: (0, 0)),
        ],
        out_specs=(
            pl.BlockSpec((tb, d_out), lambda i: (i, 0)),
            pl.BlockSpec((tb, 1), lambda i: (i, 0)),
        ),
        compiler_params=pltpu.CompilerParams(
            dimension_semantics=("parallel",),
            vmem_limit_bytes=64 << 20),
        cost_estimate=pl.CostEstimate(
            flops=flops, transcendentals=transcendentals,
            bytes_accessed=bytes_accessed),
    )(x, params["w_hidden_t"], params["b_hidden"],
      params["w_out_t"], params["b_out"],
      params["w_fc_row"], params["b_fc"])

    # score.squeeze() — matches torch's .squeeze() on (B, 1)
    return xn[:B], jnp.squeeze(score[:B])


def init_params(key, output_dim, model_depth=18):
    """Deterministic init mirroring the module's __init__:
       kaiming_normal_(mode='fan_out') -> std = sqrt(2 / out_features); bias = 0.01."""
    if model_depth == 18:
        in_dim = 512
    elif model_depth in (50, 101):
        in_dim = 2048
    else:
        raise ValueError("unsupported model_depth")
    hid = 256

    k1, k2, k3 = jax.random.split(key, 3)

    def kaiming_fan_out_t(k, out_f, in_f):
        std = math.sqrt(2.0 / out_f)
        # torch weight shape is (out_f, in_f); we store the transpose (in_f, out_f)
        w = jax.random.normal(k, (out_f, in_f), dtype=jnp.float32) * std
        return w.T

    std_fc = math.sqrt(2.0 / 1.0)
    return {
        "w_hidden_t": kaiming_fan_out_t(k1, hid, in_dim),            # (in_dim, 256)
        "b_hidden":   jnp.full((1, hid), 0.01, dtype=jnp.float32),
        "w_out_t":    kaiming_fan_out_t(k2, output_dim, hid),        # (256, D_out)
        "b_out":      jnp.full((1, output_dim), 0.01, dtype=jnp.float32),
        # fc weight kept in torch's native (1, D_out) row layout
        "w_fc_row":   jax.random.normal(k3, (1, output_dim), dtype=jnp.float32) * std_fc,
        "b_fc":       jnp.full((1, 1), 0.01, dtype=jnp.float32),
    }


def _reference(x, params):
    h = jnp.maximum(x @ params["w_hidden_t"] + params["b_hidden"], 0.0)
    z = h @ params["w_out_t"] + params["b_out"]
    norm = jnp.maximum(jnp.sqrt(jnp.sum(z * z, axis=1, keepdims=True)), 1e-12)
    xn = z / norm
    logit = jnp.sum(xn * params["w_fc_row"], axis=1, keepdims=True) + params["b_fc"]
    return xn, jnp.squeeze(jax.nn.sigmoid(logit))


if __name__ == "__main__":
    key = jax.random.PRNGKey(0)
    kx, kp = jax.random.split(key)

    batch = 30          # deliberately not a multiple of 8 to exercise padding
    output_dim = 128
    model_depth = 18    # -> hidden Linear(512, 256)

    x = jax.random.normal(kx, (batch, 512), dtype=jnp.float32)
    params = init_params(kp, output_dim, model_depth)
    xn_ref, score_ref = _reference(x, params)

    # Small block so the 1-D batch grid actually runs multiple pipelined steps.
    xn, score = projection_head_with_bce(x, params, block_batch=8)
    jax.block_until_ready((xn, score))
    assert xn.shape == (batch, output_dim)
    assert score.shape == (batch,)
    assert jnp.allclose(xn, xn_ref, atol=1e-5, rtol=1e-5)
    assert jnp.allclose(score, score_ref, atol=1e-5, rtol=1e-5)

    # Default tile (single grid step at this small batch) — same numerics.
    xn2, score2 = projection_head_with_bce(x, params)
    jax.block_until_ready((xn2, score2))
    assert jnp.allclose(xn2, xn_ref, atol=1e-5, rtol=1e-5)
    assert jnp.allclose(score2, score_ref, atol=1e-5, rtol=1e-5)

    print("KERNEL_OK")
</pallas_src>

<mosaic_0001>
module attributes {stable_mosaic.version = 11 : i64} {
  func.func @_projection_kernel(%arg0: i32, %arg1: memref<8x512xf32, #tpu.memory_space<vmem>>, %arg2: memref<512x256xf32, #tpu.memory_space<vmem>>, %arg3: memref<1x256xf32, #tpu.memory_space<vmem>>, %arg4: memref<256x128xf32, #tpu.memory_space<vmem>>, %arg5: memref<1x128xf32, #tpu.memory_space<vmem>>, %arg6: memref<1x128xf32, #tpu.memory_space<vmem>>, %arg7: memref<1x1xf32, #tpu.memory_space<vmem>>, %arg8: memref<8x128xf32, #tpu.memory_space<vmem>>, %arg9: memref<8x1xf32, #tpu.memory_space<vmem>>) attributes {dimension_semantics = [#tpu.dimension_semantics<parallel>], iteration_bounds = array<i64: 4>, scalar_prefetch = 0 : i64, scratch_operands = 0 : i64, tpu.core_type = #tpu.core_type<tc>, window_params = [{transform_indices = @transform_0, window_bounds = array<i64: 8, 512>}, {pipeline_mode = #tpu.pipeline_mode<synchronous>, transform_indices = @transform_1, window_bounds = array<i64: 512, 256>}, {pipeline_mode = #tpu.pipeline_mode<synchronous>, transform_indices = @transform_2, window_bounds = array<i64: 1, 256>}, {pipeline_mode = #tpu.pipeline_mode<synchronous>, transform_indices = @transform_3, window_bounds = array<i64: 256, 128>}, {pipeline_mode = #tpu.pipeline_mode<synchronous>, transform_indices = @transform_4, window_bounds = array<i64: 1, 128>}, {pipeline_mode = #tpu.pipeline_mode<synchronous>, transform_indices = @transform_5, window_bounds = array<i64: 1, 128>}, {pipeline_mode = #tpu.pipeline_mode<synchronous>, transform_indices = @transform_6, window_bounds = array<i64: 1, 1>}, {transform_indices = @transform_7, window_bounds = array<i64: 8, 128>}, {transform_indices = @transform_8, window_bounds = array<i64: 8, 1>}]} {
    %c0 = arith.constant 0 : index
    %c0_0 = arith.constant 0 : index
    %0 = vector.load %arg1[%c0, %c0_0] : memref<8x512xf32, #tpu.memory_space<vmem>>, vector<8x512xf32>
    %c0_1 = arith.constant 0 : index
    %c0_2 = arith.constant 0 : index
    %1 = vector.load %arg2[%c0_1, %c0_2] : memref<512x256xf32, #tpu.memory_space<vmem>>, vector<512x256xf32>
    %cst = arith.constant dense<0.000000e+00> : vector<8x256xf32>
    %2 = tpu.matmul %0, %1, %cst {dimension_numbers = #tpu.dot_dimension_numbers<[1], [0], [0], [1], [0, 0, 1, 1], [], []>} : vector<8x512xf32>, vector<512x256xf32>, vector<8x256xf32> -> vector<8x256xf32>
    %c0_3 = arith.constant 0 : index
    %c0_4 = arith.constant 0 : index
    %3 = vector.load %arg3[%c0_3, %c0_4] : memref<1x256xf32, #tpu.memory_space<vmem>>, vector<1x256xf32>
    %4 = vector.broadcast %3 : vector<1x256xf32> to vector<8x256xf32>
    %5 = arith.addf %2, %4 : vector<8x256xf32>
    %cst_5 = arith.constant 0.000000e+00 : f32
    %6 = vector.broadcast %cst_5 : f32 to vector<8x256xf32>
    %7 = arith.maximumf %5, %6 : vector<8x256xf32>
    %c0_6 = arith.constant 0 : index
    %c0_7 = arith.constant 0 : index
    %8 = vector.load %arg4[%c0_6, %c0_7] : memref<256x128xf32, #tpu.memory_space<vmem>>, vector<256x128xf32>
    %cst_8 = arith.constant dense<0.000000e+00> : vector<8x128xf32>
    %9 = tpu.matmul %7, %8, %cst_8 {dimension_numbers = #tpu.dot_dimension_numbers<[1], [0], [0], [1], [0, 0, 1, 1], [], []>} : vector<8x256xf32>, vector<256x128xf32>, vector<8x128xf32> -> vector<8x128xf32>
    %c0_9 = arith.constant 0 : index
    %c0_10 = arith.constant 0 : index
    %10 = vector.load %arg5[%c0_9, %c0_10] : memref<1x128xf32, #tpu.memory_space<vmem>>, vector<1x128xf32>
    %11 = vector.broadcast %10 : vector<1x128xf32> to vector<8x128xf32>
    %12 = arith.addf %9, %11 : vector<8x128xf32>
    %13 = arith.mulf %12, %12 : vector<8x128xf32>
    %cst_11 = arith.constant dense<0.000000e+00> : vector<8xf32>
    %14 = vector.multi_reduction <add>, %13, %cst_11 [1] : vector<8x128xf32> to vector<8xf32>
    %15 = vector.shape_cast %14 : vector<8xf32> to vector<8x1xf32>
    %cst_12 = arith.constant 1.000000e-24 : f32
    %16 = vector.broadcast %cst_12 : f32 to vector<8x1xf32>
    %17 = arith.maximumf %15, %16 : vector<8x1xf32>
    %18 = math.rsqrt %17 : vector<8x1xf32>
    %19 = vector.broadcast %18 : vector<8x1xf32> to vector<8x128xf32>
    %20 = arith.mulf %12, %19 : vector<8x128xf32>
    %c0_13 = arith.constant 0 : index
    %c0_14 = arith.constant 0 : index
    %21 = vector.load %arg6[%c0_13, %c0_14] : memref<1x128xf32, #tpu.memory_space<vmem>>, vector<1x128xf32>
    %22 = vector.broadcast %21 : vector<1x128xf32> to vector<8x128xf32>
    %23 = arith.mulf %12, %22 : vector<8x128xf32>
    %cst_15 = arith.constant dense<0.000000e+00> : vector<8xf32>
    %24 = vector.multi_reduction <add>, %23, %cst_15 [1] : vector<8x128xf32> to vector<8xf32>
    %25 = vector.shape_cast %24 : vector<8xf32> to vector<8x1xf32>
    %26 = arith.mulf %25, %18 : vector<8x1xf32>
    %c0_16 = arith.constant 0 : index
    %c0_17 = arith.constant 0 : index
    %27 = vector.load %arg7[%c0_16, %c0_17] : memref<1x1xf32, #tpu.memory_space<vmem>>, vector<1x1xf32>
    %28 = vector.broadcast %27 : vector<1x1xf32> to vector<8x1xf32>
    %29 = arith.addf %26, %28 : vector<8x1xf32>
    %30 = arith.negf %29 : vector<8x1xf32>
    %31 = math.exp %30 : vector<8x1xf32>
    %cst_18 = arith.constant 1.000000e+00 : f32
    %32 = vector.broadcast %cst_18 : f32 to vector<8x1xf32>
    %33 = arith.addf %32, %31 : vector<8x1xf32>
    %34 = arith.divf %32, %33 : vector<8x1xf32>
    %c0_19 = arith.constant 0 : index
    %c0_20 = arith.constant 0 : index
    %35 = vector.load %arg8[%c0_19, %c0_20] : memref<8x128xf32, #tpu.memory_space<vmem>>, vector<8x128xf32>
    tpu.vector_store %arg8[%c0_19, %c0_20], %20 {strides = array<i32>} : memref<8x128xf32, #tpu.memory_space<vmem>>, vector<8x128xf32>,
    %c0_21 = arith.constant 0 : index
    %c0_22 = arith.constant 0 : index
    %36 = vector.load %arg9[%c0_21, %c0_22] : memref<8x1xf32, #tpu.memory_space<vmem>>, vector<8x1xf32>
    tpu.vector_store %arg9[%c0_21, %c0_22], %34 {strides = array<i32>} : memref<8x1xf32, #tpu.memory_space<vmem>>, vector<8x1xf32>,
    return
  }
  func.func @transform_0(%arg0: i32) -> (i32, i32) {
    %c0_i32 = arith.constant 0 : i32
    %c0_i32_0 = arith.constant 0 : i32
    return %arg0, %c0_i32 : i32, i32
  }
  func.func @transform_1(%arg0: i32) -> (i32, i32) {
    %c0_i32 = arith.constant 0 : i32
    %c0_i32_0 = arith.constant 0 : i32
    %c0_i32_1 = arith.constant 0 : i32
    return %c0_i32, %c0_i32_0 : i32, i32
  }
  func.func @transform_2(%arg0: i32) -> (i32, i32) {
    %c0_i32 = arith.constant 0 : i32
    %c0_i32_0 = arith.constant 0 : i32
    %c0_i32_1 = arith.constant 0 : i32
    return %c0_i32, %c0_i32_0 : i32, i32
  }
  func.func @transform_3(%arg0: i32) -> (i32, i32) {
    %c0_i32 = arith.constant 0 : i32
    %c0_i32_0 = arith.constant 0 : i32
    %c0_i32_1 = arith.constant 0 : i32
    return %c0_i32, %c0_i32_0 : i32, i32
  }
  func.func @transform_4(%arg0: i32) -> (i32, i32) {
    %c0_i32 = arith.constant 0 : i32
    %c0_i32_0 = arith.constant 0 : i32
    %c0_i32_1 = arith.constant 0 : i32
    return %c0_i32, %c0_i32_0 : i32, i32
  }
  func.func @transform_5(%arg0: i32) -> (i32, i32) {
    %c0_i32 = arith.constant 0 : i32
    %c0_i32_0 = arith.constant 0 : i32
    %c0_i32_1 = arith.constant 0 : i32
    return %c0_i32, %c0_i32_0 : i32, i32
  }
  func.func @transform_6(%arg0: i32) -> (i32, i32) {
    %c0_i32 = arith.constant 0 : i32
    %c0_i32_0 = arith.constant 0 : i32
    %c0_i32_1 = arith.constant 0 : i32
    return %c0_i32, %c0_i32_0 : i32, i32
  }
  func.func @transform_7(%arg0: i32) -> (i32, i32) {
    %c0_i32 = arith.constant 0 : i32
    %c0_i32_0 = arith.constant 0 : i32
    return %arg0, %c0_i32 : i32, i32
  }
  func.func @transform_8(%arg0: i32) -> (i32, i32) {
    %c0_i32 = arith.constant 0 : i32
    %c0_i32_0 = arith.constant 0 : i32
    return %arg0, %c0_i32 : i32, i32
  }
}

</mosaic_0001>

<llo_original>
// kernel: tpu_custom_call.1
$region0: #{tpu_custom_call.1}
  #allocation0 [shape = 'u32[]', space=smem, size = 0x4, offset = 0x4, fixed_abs, tag = 'smem constant byte address 0x4 - core index']
  #allocation1 [shape = 'u32[144,128]{1,0:T(1,128)}', space=vmem, size = 0x12000, scoped, tag = 'internal scratch']
  #allocation2 [shape = 'f32[1,1]{1,0:T(1,128)S(1)}', space=vmem, size = 0x200, scoped, tag = 'scoped memory for tpu_custom_call.1']
  %s0 = inlined_call_operand.hbm [shape: f32[32,512], index: 0, kind: input, shape index: {}]
  %s1 = inlined_call_operand.hbm [shape: f32[512,256], index: 1, kind: input, shape index: {}]
  %s2 = inlined_call_operand.hbm [shape: f32[1,256], index: 2, kind: input, shape index: {}]
  %s3 = inlined_call_operand.hbm [shape: f32[256,128], index: 3, kind: input, shape index: {}]
  %s4 = inlined_call_operand.hbm [shape: f32[1,128], index: 4, kind: input, shape index: {}]
  %s5 = inlined_call_operand.hbm [shape: f32[1,128], index: 5, kind: input, shape index: {}]
  %s6 = inlined_call_operand.<no memory space> [shape: f32[1,1], index: 6, kind: input, shape index: {}]
  %s7 = inlined_call_operand.hbm [shape: f32[32,128], index: 7, kind: output, shape index: {0}]
  %s8 = inlined_call_operand.hbm [shape: f32[32,1], index: 8, kind: output, shape index: {1}]
  %9 = xla_tuple %s7, %s8
  %s10 = sld [smem:[#allocation0]]
  $region93: #{tpu_custom_call.1} parent=0
    _
  %s12 = ssub.s32 1, %s10
  %s13 = scalar_select 0, %s12, %s10
  %v14 = vstv %s6
  %15 = vst [vmem:[#allocation2] sm:$0x1] %v14
  $region1: #{tpu_custom_call.1} parent=0
    #allocation3 [shape = 'u8[32768]{0}', space=vmem, size = 0x8000, scoped, tag = 'input window, operand 0']
    #allocation4 [shape = 's32[2]{0}', space=sflag, size = 0x8, scoped, tag = 'scoped memory for tpu_custom_call.1']
    #allocation5 [shape = 's32[2]{0}', space=sflag, size = 0x8, scoped, tag = 'scoped memory for tpu_custom_call.1']
    #allocation6 [shape = 'u8[524288]{0}', space=vmem, size = 0x80000, scoped, tag = 'input window, operand 1, single buffered']
    #allocation7 [shape = 's32[1]{0}', space=sflag, size = 0x4, scoped, tag = 'scoped memory for tpu_custom_call.1']
    #allocation8 [shape = 'u8[1024]{0}', space=vmem, size = 0x400, scoped, tag = 'input window, operand 2, single buffered']
    #allocation9 [shape = 'u8[131072]{0}', space=vmem, size = 0x20000, scoped, tag = 'input window, operand 3, single buffered']
    #allocation10 [shape = 's32[1]{0}', space=sflag, size = 0x4, scoped, tag = 'scoped memory for tpu_custom_call.1']
    #allocation11 [shape = 'u8[512]{0}', space=vmem, size = 0x400, scoped, tag = 'input window, operand 4, single buffered']
    #allocation12 [shape = 'u8[512]{0}', space=vmem, size = 0x400, scoped, tag = 'input window, operand 5, single buffered']
    #allocation13 [shape = 's32[1]{0}', space=sflag, size = 0x4, scoped, tag = 'scoped memory for tpu_custom_call.1']
    #allocation14 [shape = 'u8[8192]{0}', space=vmem, size = 0x2000, scoped, tag = 'output window, operand 0']
    #allocation15 [shape = 'u8[8192]{0}', space=vmem, size = 0x2000, scoped, tag = 'output window, operand 1']
    #allocation16 [shape = 's32[2]{0}', space=sflag, size = 0x8, scoped, tag = 'scoped memory for tpu_custom_call.1']
    %16 = vsyncpa [#allocation4], 0
    %s17 = scalar_lea.sflag [#allocation4], 1
    %18 = vsyncpa %s17, 0
    %19 = vsyncpa [#allocation7], 0
    %20 = vsyncpa [#allocation10], 0
    %21 = vsyncpa [#allocation13], 0
    %22 = vsyncpa [#allocation5], 0
    %s23 = scalar_lea.sflag [#allocation5], 1
    %24 = vsyncpa %s23, 0
    %25 = vsyncpa [#allocation16], 0
    %s26 = scalar_lea.sflag [#allocation16], 1
    %27 = vsyncpa %s26, 0
    loop: start=0, step=1, limit=6
    $region2: #{tpu_custom_call.1} parent=1 // loop_pre_header
      _
    $region3: #{tpu_custom_call.1} parent=1 // loop_header
      %s29 = sphi 0, %s33
      %p30 = scmp.ge.s32.totalorder %s29, 6
      %s39 = sphi 0, %s41
      %s42 = sphi 0, %s39
      %s43 = sphi 0, %s42
      %s59 = sphi 0, %s43
      %s63 = sphi 0, %s63
      %s65 = sphi 0, %s63
      %s66 = sphi 0, %s65
      %s80 = sphi 0, %s66
      %s84 = sphi 0, %s84
      %s86 = sphi 0, %s84
      %s87 = sphi 0, %s86
      %s101 = sphi 0, %s87
      %s105 = sphi 0, %s105
      %s107 = sphi 0, %s105
      %s108 = sphi 0, %s107
      %s122 = sphi 0, %s108
      %s126 = sphi 0, %s126
      %s128 = sphi 0, %s126
      %s129 = sphi 0, %s128
      %s143 = sphi 0, %s129
      %s147 = sphi 0, %s147
      %s149 = sphi 0, %s147
      %s150 = sphi 0, %s149
      %s164 = sphi 0, %s150
      %s168 = sphi 0, %s168
      %s170 = sphi 0, %s168
      %s171 = sphi 0, %s170
      %s185 = sphi 0, %s171
      %s191 = sphi 0, %s193
      %s194 = sphi 0, %s191
      %s195 = sphi 0, %s194
      %s211 = sphi 0, %s195
      %s217 = sphi 0, %s219
      %s220 = sphi 0, %s217
      %s221 = sphi 0, %s220
      %s237 = sphi 0, %s221
    $region4: #{tpu_custom_call.1} parent=1 // loop_header_branch
      %32 = sbr.rel (%p30) target = $region8
    $region5: #{tpu_custom_call.1} parent=1 // loop_body
      %s34 = ssub.s32 %s29, 1
      %s35 = ssub.s32 %s29, 2
      %s36 = sadd.s32 %s29, 1
      %s37 = ssub.s32 %s29, %s36
      %p38 = scmp.eq.s32.totalorder %s37, 0
      %s40 = sadd.s32 %s39, 1
      %s41 = scalar_select %p38, %s39, %s40
      %p44 = pneg %p38
      %p45 = scmp.eq.s32.totalorder %s29, 3
      %p46 = por %p44, %p45
      %p47 = scmp.ne.s32.totalorder %s39, %s42
      %p48 = scmp.eq.s32.totalorder %s29, 0
      %p49 = por %p47, %p48
      %p50 = scmp.ne.s32.totalorder %s39, %s42
      %p51 = scmp.eq.s32.totalorder %s34, 3
      %p52 = por %p50, %p51
      %p53 = scmp.ne.s32.totalorder %s42, %s43
      %p54 = scmp.eq.s32.totalorder %s34, 0
      %p55 = por %p53, %p54
      %p56 = scmp.ne.s32.totalorder %s42, %s43
      %p57 = scmp.eq.s32.totalorder %s35, 3
      %p58 = por %p56, %p57
      %p60 = scmp.ne.s32.totalorder %s43, %s59
      %p61 = scmp.eq.s32.totalorder %s35, 0
      %p62 = por %p60, %p61
      %s64 = sadd.s32 %s63, 1
      %p67 = scmp.eq.s32.totalorder %s29, 3
      %p68 = scmp.ne.s32.totalorder %s63, %s65
      %p69 = scmp.eq.s32.totalorder %s29, 0
      %p70 = por %p68, %p69
      %p71 = scmp.ne.s32.totalorder %s63, %s65
      %p72 = scmp.eq.s32.totalorder %s34, 3
      %p73 = por %p71, %p72
      %p74 = scmp.ne.s32.totalorder %s65, %s66
      %p75 = scmp.eq.s32.totalorder %s34, 0
      %p76 = por %p74, %p75
      %p77 = scmp.ne.s32.totalorder %s65, %s66
      %p78 = scmp.eq.s32.totalorder %s35, 3
      %p79 = por %p77, %p78
      %p81 = scmp.ne.s32.totalorder %s66, %s80
      %p82 = scmp.eq.s32.totalorder %s35, 0
      %p83 = por %p81, %p82
      %s85 = sadd.s32 %s84, 1
      %p88 = scmp.eq.s32.totalorder %s29, 3
      %p89 = scmp.ne.s32.totalorder %s84, %s86
      %p90 = scmp.eq.s32.totalorder %s29, 0
      %p91 = por %p89, %p90
      %p92 = scmp.ne.s32.totalorder %s84, %s86
      %p93 = scmp.eq.s32.totalorder %s34, 3
      %p94 = por %p92, %p93
      %p95 = scmp.ne.s32.totalorder %s86, %s87
      %p96 = scmp.eq.s32.totalorder %s34, 0
      %p97 = por %p95, %p96
      %p98 = scmp.ne.s32.totalorder %s86, %s87
      %p99 = scmp.eq.s32.totalorder %s35, 3
      %p100 = por %p98, %p99
      %p102 = scmp.ne.s32.totalorder %s87, %s101
      %p103 = scmp.eq.s32.totalorder %s35, 0
      %p104 = por %p102, %p103
      %s106 = sadd.s32 %s105, 1
      %p109 = scmp.eq.s32.totalorder %s29, 3
      %p110 = scmp.ne.s32.totalorder %s105, %s107
      %p111 = scmp.eq.s32.totalorder %s29, 0
      %p112 = por %p110, %p111
      %p113 = scmp.ne.s32.totalorder %s105, %s107
      %p114 = scmp.eq.s32.totalorder %s34, 3
      %p115 = por %p113, %p114
      %p116 = scmp.ne.s32.totalorder %s107, %s108
      %p117 = scmp.eq.s32.totalorder %s34, 0
      %p118 = por %p116, %p117
      %p119 = scmp.ne.s32.totalorder %s107, %s108
      %p120 = scmp.eq.s32.totalorder %s35, 3
      %p121 = por %p119, %p120
      %p123 = scmp.ne.s32.totalorder %s108, %s122
      %p124 = scmp.eq.s32.totalorder %s35, 0
      %p125 = por %p123, %p124
      %s127 = sadd.s32 %s126, 1
      %p130 = scmp.eq.s32.totalorder %s29, 3
      %p131 = scmp.ne.s32.totalorder %s126, %s128
      %p132 = scmp.eq.s32.totalorder %s29, 0
      %p133 = por %p131, %p132
      %p134 = scmp.ne.s32.totalorder %s126, %s128
      %p135 = scmp.eq.s32.totalorder %s34, 3
      %p136 = por %p134, %p135
      %p137 = scmp.ne.s32.totalorder %s128, %s129
      %p138 = scmp.eq.s32.totalorder %s34, 0
      %p139 = por %p137, %p138
      %p140 = scmp.ne.s32.totalorder %s128, %s129
      %p141 = scmp.eq.s32.totalorder %s35, 3
      %p142 = por %p140, %p141
      %p144 = scmp.ne.s32.totalorder %s129, %s143
      %p145 = scmp.eq.s32.totalorder %s35, 0
      %p146 = por %p144, %p145
      %s148 = sadd.s32 %s147, 1
      %p151 = scmp.eq.s32.totalorder %s29, 3
      %p152 = scmp.ne.s32.totalorder %s147, %s149
      %p153 = scmp.eq.s32.totalorder %s29, 0
      %p154 = por %p152, %p153
      %p155 = scmp.ne.s32.totalorder %s147, %s149
      %p156 = scmp.eq.s32.totalorder %s34, 3
      %p157 = por %p155, %p156
      %p158 = scmp.ne.s32.totalorder %s149, %s150
      %p159 = scmp.eq.s32.totalorder %s34, 0
      %p160 = por %p158, %p159
      %p161 = scmp.ne.s32.totalorder %s149, %s150
      %p162 = scmp.eq.s32.totalorder %s35, 3
      %p163 = por %p161, %p162
      %p165 = scmp.ne.s32.totalorder %s150, %s164
      %p166 = scmp.eq.s32.totalorder %s35, 0
      %p167 = por %p165, %p166
      %s169 = sadd.s32 %s168, 1
      %p172 = scmp.eq.s32.totalorder %s29, 3
      %p173 = scmp.ne.s32.totalorder %s168, %s170
      %p174 = scmp.eq.s32.totalorder %s29, 0
      %p175 = por %p173, %p174
      %p176 = scmp.ne.s32.totalorder %s168, %s170
      %p177 = scmp.eq.s32.totalorder %s34, 3
      %p178 = por %p176, %p177
      %p179 = scmp.ne.s32.totalorder %s170, %s171
      %p180 = scmp.eq.s32.totalorder %s34, 0
      %p181 = por %p179, %p180
      %p182 = scmp.ne.s32.totalorder %s170, %s171
      %p183 = scmp.eq.s32.totalorder %s35, 3
      %p184 = por %p182, %p183
      %p186 = scmp.ne.s32.totalorder %s171, %s185
      %p187 = scmp.eq.s32.totalorder %s35, 0
      %p188 = por %p186, %p187
      %s189 = ssub.s32 %s29, %s36
      %p190 = scmp.eq.s32.totalorder %s189, 0
      %s192 = sadd.s32 %s191, 1
      %s193 = scalar_select %p190, %s191, %s192
      %p196 = pneg %p190
      %p197 = scmp.eq.s32.totalorder %s29, 3
      %p198 = por %p196, %p197
      %p199 = scmp.ne.s32.totalorder %s191, %s194
      %p200 = scmp.eq.s32.totalorder %s29, 0
      %p201 = por %p199, %p200
      %p202 = scmp.ne.s32.totalorder %s191, %s194
      %p203 = scmp.eq.s32.totalorder %s34, 3
      %p204 = por %p202, %p203
      %p205 = scmp.ne.s32.totalorder %s194, %s195
      %p206 = scmp.eq.s32.totalorder %s34, 0
      %p207 = por %p205, %p206
      %p208 = scmp.ne.s32.totalorder %s194, %s195
      %p209 = scmp.eq.s32.totalorder %s35, 3
      %p210 = por %p208, %p209
      %p212 = scmp.ne.s32.totalorder %s195, %s211
      %p213 = scmp.eq.s32.totalorder %s35, 0
      %p214 = por %p212, %p213
      %s215 = ssub.s32 %s29, %s36
      %p216 = scmp.eq.s32.totalorder %s215, 0
      %s218 = sadd.s32 %s217, 1
      %s219 = scalar_select %p216, %s217, %s218
      %p222 = pneg %p216
      %p223 = scmp.eq.s32.totalorder %s29, 3
      %p224 = por %p222, %p223
      %p225 = scmp.ne.s32.totalorder %s217, %s220
      %p226 = scmp.eq.s32.totalorder %s29, 0
      %p227 = por %p225, %p226
      %p228 = scmp.ne.s32.totalorder %s217, %s220
      %p229 = scmp.eq.s32.totalorder %s34, 3
      %p230 = por %p228, %p229
      %p231 = scmp.ne.s32.totalorder %s220, %s221
      %p232 = scmp.eq.s32.totalorder %s34, 0
      %p233 = por %p231, %p232
      %p234 = scmp.ne.s32.totalorder %s220, %s221
      %p235 = scmp.eq.s32.totalorder %s35, 3
      %p236 = por %p234, %p235
      %p238 = scmp.ne.s32.totalorder %s221, %s237
      %p239 = scmp.eq.s32.totalorder %s35, 0
      %p240 = por %p238, %p239
      %p241 = scmp.le.s32.totalorder 1, %s29
      %p242 = scmp.lt.s32.totalorder %s29, 5
      %p243 = pnand %p241, %p242
      %p244 = pneg %p243
      // Predicated region
      $region9: #{tpu_custom_call.1} parent=5 // pred_check
        _
      $region10: #{tpu_custom_call.1} parent=5 // pred_check_branch
        %246 = sbr.rel (%p243) target = $region12
      $region11: #{tpu_custom_call.1} parent=5 // pred_region
        %s247 = ssub.s32 %s29, 1
        // Predicated region
        $region13: #{tpu_custom_call.1} parent=11 // pred_check
          %p248 = pneg %p76
        $region14: #{tpu_custom_call.1} parent=11 // pred_check_branch
          %250 = sbr.rel (%p248) target = $region16
        $region15: #{tpu_custom_call.1} parent=11 // pred_region
          %s252 = ssub.s32 16384, 16384
          %253 = vsyncadd [#allocation7], %s252
          %s254 = sshll.u32 [#allocation6], 4
          %s255 = int_to_ptr.vmem [resolvable:$true] %s254
          %260 = dma.hbm_to_vmem [thread:$0]  %s1, 16384, %s255, [#allocation7], 256, 256, 16
        $region16: #{tpu_custom_call.1} parent=11 // pred_fallthru
          _
        // Predicated region
        $region17: #{tpu_custom_call.1} parent=11 // pred_check
          %p261 = pneg %p97
        $region18: #{tpu_custom_call.1} parent=11 // pred_check_branch
          %263 = sbr.rel (%p261) target = $region20
        $region19: #{tpu_custom_call.1} parent=11 // pred_region
          %s265 = ssub.s32 32, 32
          %266 = vsyncadd [#allocation7], %s265
          %s268 = sshll.u32 [#allocation8], 4
          %s269 = int_to_ptr.vmem [resolvable:$true] %s268
          %271 = dma.hbm_to_vmem [thread:$0]  %s2, 32, %s269, [#allocation7]
        $region20: #{tpu_custom_call.1} parent=11 // pred_fallthru
          _
        // Predicated region
        $region21: #{tpu_custom_call.1} parent=11 // pred_check
          %p272 = pneg %p118
        $region22: #{tpu_custom_call.1} parent=11 // pred_check_branch
          %274 = sbr.rel (%p272) target = $region24
        $region23: #{tpu_custom_call.1} parent=11 // pred_region
          %s276 = ssub.s32 4096, 4096
          %277 = vsyncadd [#allocation10], %s276
          %s278 = sshll.u32 [#allocation9], 4
          %s279 = int_to_ptr.vmem [resolvable:$true] %s278
          %284 = dma.hbm_to_vmem [thread:$0]  %s3, 4096, %s279, [#allocation10], 128, 128, 8
        $region24: #{tpu_custom_call.1} parent=11 // pred_fallthru
          _
        // Predicated region
        $region25: #{tpu_custom_call.1} parent=11 // pred_check
          %p285 = pneg %p139
        $region26: #{tpu_custom_call.1} parent=11 // pred_check_branch
          %287 = sbr.rel (%p285) target = $region28
        $region27: #{tpu_custom_call.1} parent=11 // pred_region
          %s289 = ssub.s32 16, 16
          %290 = vsyncadd [#allocation10], %s289
          %s292 = sshll.u32 [#allocation11], 4
          %s293 = int_to_ptr.vmem [resolvable:$true] %s292
          %295 = dma.hbm_to_vmem [thread:$0]  %s4, 16, %s293, [#allocation10]
        $region28: #{tpu_custom_call.1} parent=11 // pred_fallthru
          _
        // Predicated region
        $region29: #{tpu_custom_call.1} parent=11 // pred_check
          %p296 = pneg %p160
        $region30: #{tpu_custom_call.1} parent=11 // pred_check_branch
          %298 = sbr.rel (%p296) target = $region32
        $region31: #{tpu_custom_call.1} parent=11 // pred_region
          %s300 = ssub.s32 16, 16
          %301 = vsyncadd [#allocation13], %s300
          %s303 = sshll.u32 [#allocation12], 4
          %s304 = int_to_ptr.vmem [resolvable:$true] %s303
          %306 = dma.hbm_to_vmem [thread:$0]  %s5, 16, %s304, [#allocation13]
        $region32: #{tpu_custom_call.1} parent=11 // pred_fallthru
          _
        // Predicated region
        $region33: #{tpu_custom_call.1} parent=11 // pred_check
          %p307 = pneg %p181
        $region34: #{tpu_custom_call.1} parent=11 // pred_check_branch
          %309 = sbr.rel (%p307) target = $region36
        $region35: #{tpu_custom_call.1} parent=11 // pred_region
          _
        $region36: #{tpu_custom_call.1} parent=11 // pred_fallthru
          _
      $region12: #{tpu_custom_call.1} parent=5 // pred_fallthru
        _
      %p310 = scmp.lt.s32.totalorder %s29, 4
      // Predicated region
      $region37: #{tpu_custom_call.1} parent=5 // pred_check
        %p311 = pneg %p310
      $region38: #{tpu_custom_call.1} parent=5 // pred_check_branch
        %313 = sbr.rel (%p311) target = $region40
      $region39: #{tpu_custom_call.1} parent=5 // pred_region
        // Predicated region
        $region41: #{tpu_custom_call.1} parent=39 // pred_check
          %p314 = pneg %p49
        $region42: #{tpu_custom_call.1} parent=39 // pred_check_branch
          %316 = sbr.rel (%p314) target = $region44
        $region43: #{tpu_custom_call.1} parent=39 // pred_region
          %s317 = sand.u32 %s39, 1
          %s318 = scalar_lea.sflag [#allocation4], %s317
          %s319 = sand.u32 %s39, 1
          %s320 = smul.addr %s319, 32
          %s321 = scalar_lea.vmem [#allocation3], %s320
          %s323 = ssub.s32 512, 512
          %324 = vsyncadd %s318, %s323
          %s325 = smul.addr %s29, 4
          %s326 = smul.addr %s325, 128
          %s327 = scalar_lea.hbm %s0, %s326
          %s329 = sshll.u32 %s321, 4
          %s330 = int_to_ptr.vmem [resolvable:$true] %s329
          %332 = dma.hbm_to_vmem [thread:$0]  %s327, 512, %s330, %s318
        $region44: #{tpu_custom_call.1} parent=39 // pred_fallthru
          _
      $region40: #{tpu_custom_call.1} parent=5 // pred_fallthru
        _
      %p333 = scmp.le.s32.totalorder 1, %s29
      %p334 = scmp.lt.s32.totalorder %s29, 5
      %p335 = pnand %p333, %p334
      %p336 = pneg %p335
      // Predicated region
      $region45: #{tpu_custom_call.1} parent=5 // pred_check
        _
      $region46: #{tpu_custom_call.1} parent=5 // pred_check_branch
        %338 = sbr.rel (%p335) target = $region48
      $region47: #{tpu_custom_call.1} parent=5 // pred_region
        %s339 = ssub.s32 %s29, 1
        %s340 = sand.u32 %s42, 1
        %s341 = scalar_lea.sflag [#allocation4], %s340
        %s342 = sand.u32 %s42, 1
        %s343 = smul.addr %s342, 32
        %s344 = scalar_lea.vmem [#allocation3], %s343
        // Predicated region
        $region49: #{tpu_custom_call.1} parent=47 // pred_check
          %p345 = pneg %p55
        $region50: #{tpu_custom_call.1} parent=47 // pred_check_branch
          %347 = sbr.rel (%p345) target = $region52
        $region51: #{tpu_custom_call.1} parent=47 // pred_region
          %348 = dma.done %s341, 512
        $region52: #{tpu_custom_call.1} parent=47 // pred_fallthru
          _
        // Predicated region
        $region53: #{tpu_custom_call.1} parent=47 // pred_check
          %p349 = pneg %p76
        $region54: #{tpu_custom_call.1} parent=47 // pred_check_branch
          %351 = sbr.rel (%p349) target = $region56
        $region55: #{tpu_custom_call.1} parent=47 // pred_region
          %352 = dma.done [#allocation7], 16384
        $region56: #{tpu_custom_call.1} parent=47 // pred_fallthru
          _
        // Predicated region
        $region57: #{tpu_custom_call.1} parent=47 // pred_check
          %p353 = pneg %p97
        $region58: #{tpu_custom_call.1} parent=47 // pred_check_branch
          %355 = sbr.rel (%p353) target = $region60
        $region59: #{tpu_custom_call.1} parent=47 // pred_region
          %356 = dma.done [#allocation7], 32
        $region60: #{tpu_custom_call.1} parent=47 // pred_fallthru
          _
        // Predicated region
        $region61: #{tpu_custom_call.1} parent=47 // pred_check
          %p357 = pneg %p118
        $region62: #{tpu_custom_call.1} parent=47 // pred_check_branch
          %359 = sbr.rel (%p357) target = $region64
        $region63: #{tpu_custom_call.1} parent=47 // pred_region
          %360 = dma.done [#allocation10], 4096
        $region64: #{tpu_custom_call.1} parent=47 // pred_fallthru
          _
        // Predicated region
        $region65: #{tpu_custom_call.1} parent=47 // pred_check
          %p361 = pneg %p139
        $region66: #{tpu_custom_call.1} parent=47 // pred_check_branch
          %363 = sbr.rel (%p361) target = $region68
        $region67: #{tpu_custom_call.1} parent=47 // pred_region
          %364 = dma.done [#allocation10], 16
        $region68: #{tpu_custom_call.1} parent=47 // pred_fallthru
          _
        // Predicated region
        $region69: #{tpu_custom_call.1} parent=47 // pred_check
          %p365 = pneg %p160
        $region70: #{tpu_custom_call.1} parent=47 // pred_check_branch
          %367 = sbr.rel (%p365) target = $region72
        $region71: #{tpu_custom_call.1} parent=47 // pred_region
          %368 = dma.done [#allocation13], 16
        $region72: #{tpu_custom_call.1} parent=47 // pred_fallthru
          _
        %s369 = sand.u32 %s42, 1
        %s370 = scalar_lea.sflag [#allocation4], %s369
        %s371 = sand.u32 %s42, 1
        %s372 = smul.addr %s371, 32
        %s373 = scalar_lea.vmem [#allocation3], %s372
        %p374 = pneg %p55
        %p375 = pneg %p52
        %p376 = pneg %p76
        %p377 = pneg %p73
        %p378 = pneg %p97
        %p379 = pneg %p94
        %p380 = pneg %p118
        %p381 = pneg %p115
        %p382 = pneg %p139
        %p383 = pneg %p136
        %p384 = pneg %p160
        %p385 = pneg %p157
        %p386 = pneg %p181
        %p387 = pneg %p178
        %p388 = pneg %p207
        %p389 = pneg %p204
        %s390 = sand.u32 %s194, 1
        %s391 = scalar_lea.sflag [#allocation5], %s390
        %s392 = sand.u32 %s194, 1
        %s393 = smul.addr %s392, 8
        %s394 = scalar_lea.vmem [#allocation14], %s393
        %p395 = pneg %p233
        %p396 = pneg %p230
        %s397 = sand.u32 %s220, 1
        %s398 = scalar_lea.sflag [#allocation16], %s397
        %s399 = sand.u32 %s220, 1
        %s400 = smul.addr %s399, 8
        %s401 = scalar_lea.vmem [#allocation15], %s400
        %v402 = vld [vmem:[%s344] sm:$0xff]
        %v403 = vld [vmem:[%s344 + $0x8] sm:$0xff]
        %v404 = vld [vmem:[%s344 + $0x10] sm:$0xff]
        %v405 = vld [vmem:[%s344 + $0x18] sm:$0xff]
        %v406 = vld [vmem:[#allocation6] sm:$0xff]
        %v407 = vld [vmem:[#allocation6 + $0x8] sm:$0xff]
        %v408 = vld [vmem:[#allocation6 + $0x10] sm:$0xff]
        %v409 = vld [vmem:[#allocation6 + $0x18] sm:$0xff]
        %v410 = vld [vmem:[#allocation6 + $0x20] sm:$0xff]
        %v411 = vld [vmem:[#allocation6 + $0x28] sm:$0xff]
        %v412 = vld [vmem:[#allocation6 + $0x30] sm:$0xff]
        %v413 = vld [vmem:[#allocation6 + $0x38] sm:$0xff]
        %v414 = vld [vmem:[#allocation6 + $0x40] sm:$0xff]
        %v415 = vld [vmem:[#allocation6 + $0x48] sm:$0xff]
        %v416 = vld [vmem:[#allocation6 + $0x50] sm:$0xff]
        %v417 = vld [vmem:[#allocation6 + $0x58] sm:$0xff]
        %v418 = vld [vmem:[#allocation6 + $0x60] sm:$0xff]
        %v419 = vld [vmem:[#allocation6 + $0x68] sm:$0xff]
        %v420 = vld [vmem:[#allocation6 + $0x70] sm:$0xff]
        %v421 = vld [vmem:[#allocation6 + $0x78] sm:$0xff]
        %v422 = vld [vmem:[#allocation6 + $0x80] sm:$0xff]
        %v423 = vld [vmem:[#allocation6 + $0x88] sm:$0xff]
        %v424 = vld [vmem:[#allocation6 + $0x90] sm:$0xff]
        %v425 = vld [vmem:[#allocation6 + $0x98] sm:$0xff]
        %v426 = vld [vmem:[#allocation6 + $0xa0] sm:$0xff]
        %v427 = vld [vmem:[#allocation6 + $0xa8] sm:$0xff]
        %v428 = vld [vmem:[#allocation6 + $0xb0] sm:$0xff]
        %v429 = vld [vmem:[#allocation6 + $0xb8] sm:$0xff]
        %v430 = vld [vmem:[#allocation6 + $0xc0] sm:$0xff]
        %v431 = vld [vmem:[#allocation6 + $0xc8] sm:$0xff]
        %v432 = vld [vmem:[#allocation6 + $0xd0] sm:$0xff]
        %v433 = vld [vmem:[#allocation6 + $0xd8] sm:$0xff]
        %v434 = vld [vmem:[#allocation6 + $0xe0] sm:$0xff]
        %v435 = vld [vmem:[#allocation6 + $0xe8] sm:$0xff]
        %v436 = vld [vmem:[#allocation6 + $0xf0] sm:$0xff]
        %v437 = vld [vmem:[#allocation6 + $0xf8] sm:$0xff]
        %v438 = vld [vmem:[#allocation6 + $0x100] sm:$0xff]
        %v439 = vld [vmem:[#allocation6 + $0x108] sm:$0xff]
        %v440 = vld [vmem:[#allocation6 + $0x110] sm:$0xff]
        %v441 = vld [vmem:[#allocation6 + $0x118] sm:$0xff]
        %v442 = vld [vmem:[#allocation6 + $0x120] sm:$0xff]
        %v443 = vld [vmem:[#allocation6 + $0x128] sm:$0xff]
        %v444 = vld [vmem:[#allocation6 + $0x130] sm:$0xff]
        %v445 = vld [vmem:[#allocation6 + $0x138] sm:$0xff]
        %v446 = vld [vmem:[#allocation6 + $0x140] sm:$0xff]
        %v447 = vld [vmem:[#allocation6 + $0x148] sm:$0xff]
        %v448 = vld [vmem:[#allocation6 + $0x150] sm:$0xff]
        %v449 = vld [vmem:[#allocation6 + $0x158] sm:$0xff]
        %v450 = vld [vmem:[#allocation6 + $0x160] sm:$0xff]
        %v451 = vld [vmem:[#allocation6 + $0x168] sm:$0xff]
        %v452 = vld [vmem:[#allocation6 + $0x170] sm:$0xff]
        %v453 = vld [vmem:[#allocation6 + $0x178] sm:$0xff]
        %v454 = vld [vmem:[#allocation6 + $0x180] sm:$0xff]
        %v455 = vld [vmem:[#allocation6 + $0x188] sm:$0xff]
        %v456 = vld [vmem:[#allocation6 + $0x190] sm:$0xff]
        %v457 = vld [vmem:[#allocation6 + $0x198] sm:$0xff]
        %v458 = vld [vmem:[#allocation6 + $0x1a0] sm:$0xff]
        %v459 = vld [vmem:[#allocation6 + $0x1a8] sm:$0xff]
        %v460 = vld [vmem:[#allocation6 + $0x1b0] sm:$0xff]
        %v461 = vld [vmem:[#allocation6 + $0x1b8] sm:$0xff]
        %v462 = vld [vmem:[#allocation6 + $0x1c0] sm:$0xff]
        %v463 = vld [vmem:[#allocation6 + $0x1c8] sm:$0xff]
        %v464 = vld [vmem:[#allocation6 + $0x1d0] sm:$0xff]
        %v465 = vld [vmem:[#allocation6 + $0x1d8] sm:$0xff]
        %v466 = vld [vmem:[#allocation6 + $0x1e0] sm:$0xff]
        %v467 = vld [vmem:[#allocation6 + $0x1e8] sm:$0xff]
        %v468 = vld [vmem:[#allocation6 + $0x1f0] sm:$0xff]
        %v469 = vld [vmem:[#allocation6 + $0x1f8] sm:$0xff]
        %v470 = vld [vmem:[#allocation6 + $0x200] sm:$0xff]
        %v471 = vld [vmem:[#allocation6 + $0x208] sm:$0xff]
        %v472 = vld [vmem:[#allocation6 + $0x210] sm:$0xff]
        %v473 = vld [vmem:[#allocation6 + $0x218] sm:$0xff]
        %v474 = vld [vmem:[#allocation6 + $0x220] sm:$0xff]
        %v475 = vld [vmem:[#allocation6 + $0x228] sm:$0xff]
        %v476 = vld [vmem:[#allocation6 + $0x230] sm:$0xff]
        %v477 = vld [vmem:[#allocation6 + $0x238] sm:$0xff]
        %v478 = vld [vmem:[#allocation6 + $0x240] sm:$0xff]
        %v479 = vld [vmem:[#allocation6 + $0x248] sm:$0xff]
        %v480 = vld [vmem:[#allocation6 + $0x250] sm:$0xff]
        %v481 = vld [vmem:[#allocation6 + $0x258] sm:$0xff]
        %v482 = vld [vmem:[#allocation6 + $0x260] sm:$0xff]
        %v483 = vld [vmem:[#allocation6 + $0x268] sm:$0xff]
        %v484 = vld [vmem:[#allocation6 + $0x270] sm:$0xff]
        %v485 = vld [vmem:[#allocation6 + $0x278] sm:$0xff]
        %v486 = vld [vmem:[#allocation6 + $0x280] sm:$0xff]
        %v487 = vld [vmem:[#allocation6 + $0x288] sm:$0xff]
        %v488 = vld [vmem:[#allocation6 + $0x290] sm:$0xff]
        %v489 = vld [vmem:[#allocation6 + $0x298] sm:$0xff]
        %v490 = vld [vmem:[#allocation6 + $0x2a0] sm:$0xff]
        %v491 = vld [vmem:[#allocation6 + $0x2a8] sm:$0xff]
        %v492 = vld [vmem:[#allocation6 + $0x2b0] sm:$0xff]
        %v493 = vld [vmem:[#allocation6 + $0x2b8] sm:$0xff]
        %v494 = vld [vmem:[#allocation6 + $0x2c0] sm:$0xff]
        %v495 = vld [vmem:[#allocation6 + $0x2c8] sm:$0xff]
        %v496 = vld [vmem:[#allocation6 + $0x2d0] sm:$0xff]
        %v497 = vld [vmem:[#allocation6 + $0x2d8] sm:$0xff]
        %v498 = vld [vmem:[#allocation6 + $0x2e0] sm:$0xff]
        %v499 = vld [vmem:[#allocation6 + $0x2e8] sm:$0xff]
        %v500 = vld [vmem:[#allocation6 + $0x2f0] sm:$0xff]
        %v501 = vld [vmem:[#allocation6 + $0x2f8] sm:$0xff]
        %v502 = vld [vmem:[#allocation6 + $0x300] sm:$0xff]
        %v503 = vld [vmem:[#allocation6 + $0x308] sm:$0xff]
        %v504 = vld [vmem:[#allocation6 + $0x310] sm:$0xff]
        %v505 = vld [vmem:[#allocation6 + $0x318] sm:$0xff]
        %v506 = vld [vmem:[#allocation6 + $0x320] sm:$0xff]
        %v507 = vld [vmem:[#allocation6 + $0x328] sm:$0xff]
        %v508 = vld [vmem:[#allocation6 + $0x330] sm:$0xff]
        %v509 = vld [vmem:[#allocation6 + $0x338] sm:$0xff]
        %v510 = vld [vmem:[#allocation6 + $0x340] sm:$0xff]
        %v511 = vld [vmem:[#allocation6 + $0x348] sm:$0xff]
        %v512 = vld [vmem:[#allocation6 + $0x350] sm:$0xff]
        %v513 = vld [vmem:[#allocation6 + $0x358] sm:$0xff]
        %v514 = vld [vmem:[#allocation6 + $0x360] sm:$0xff]
        %v515 = vld [vmem:[#allocation6 + $0x368] sm:$0xff]
        %v516 = vld [vmem:[#allocation6 + $0x370] sm:$0xff]
        %v517 = vld [vmem:[#allocation6 + $0x378] sm:$0xff]
        %v518 = vld [vmem:[#allocation6 + $0x380] sm:$0xff]
        %v519 = vld [vmem:[#allocation6 + $0x388] sm:$0xff]
        %v520 = vld [vmem:[#allocation6 + $0x390] sm:$0xff]
        %v521 = vld [vmem:[#allocation6 + $0x398] sm:$0xff]
        %v522 = vld [vmem:[#allocation6 + $0x3a0] sm:$0xff]
        %v523 = vld [vmem:[#allocation6 + $0x3a8] sm:$0xff]
        %v524 = vld [vmem:[#allocation6 + $0x3b0] sm:$0xff]
        %v525 = vld [vmem:[#allocation6 + $0x3b8] sm:$0xff]
        %v526 = vld [vmem:[#allocation6 + $0x3c0] sm:$0xff]
        %v527 = vld [vmem:[#allocation6 + $0x3c8] sm:$0xff]
        %v528 = vld [vmem:[#allocation6 + $0x3d0] sm:$0xff]
        %v529 = vld [vmem:[#allocation6 + $0x3d8] sm:$0xff]
        %v530 = vld [vmem:[#allocation6 + $0x3e0] sm:$0xff]
        %v531 = vld [vmem:[#allocation6 + $0x3e8] sm:$0xff]
        %v532 = vld [vmem:[#allocation6 + $0x3f0] sm:$0xff]
        %v533 = vld [vmem:[#allocation6 + $0x3f8] sm:$0xff]
        %v534 = vld [vmem:[#allocation8] sm:$0x3]
        %v536 = vlaneseq
        %v537 = vshrl.u32 %v536, 7
        %v538 = vsub.s32 0, %v537
        %v539 = vrot.slane %v534, %v538
        %v540 = vlaneseq
        %v541 = vshrl.u32 %v540, 7
        %v542 = vsub.s32 1, %v541
        %v543 = vrot.slane %v534, %v542
        %546 = vmatprep.subr.mxu0 %v407
        %547 = vmatpush1.msra.mxu0 %v406
        %548 = vmatprep.subr.mxu0 %v409
        %549 = vmatpush1.msra.mxu0 %v408
        %550 = vmatprep.subr.mxu0 %v411
        %551 = vmatpush1.msra.mxu0 %v410
        %552 = vmatprep.subr.mxu0 %v413
        %553 = vmatpush1.msra.mxu0 %v412
        %554 = vmatprep.subr.mxu0 %v415
        %555 = vmatpush1.msra.mxu0 %v414
        %556 = vmatprep.subr.mxu0 %v417
        %557 = vmatpush1.msra.mxu0 %v416
        %558 = vmatprep.subr.mxu0 %v419
        %559 = vmatpush1.msra.mxu0 %v418
        %560 = vmatprep.subr.mxu0 %v421
        %561 = vmatpush1.msra.mxu0 %v420
        %562 = vmatprep.subr.mxu0 %v423
        %563 = vmatpush1.msra.mxu0 %v422
        %564 = vmatprep.subr.mxu0 %v425
        %565 = vmatpush1.msra.mxu0 %v424
        %566 = vmatprep.subr.mxu0 %v427
        %567 = vmatpush1.msra.mxu0 %v426
        %568 = vmatprep.subr.mxu0 %v429
        %569 = vmatpush1.msra.mxu0 %v428
        %570 = vmatprep.subr.mxu0 %v431
        %571 = vmatpush1.msra.mxu0 %v430
        %572 = vmatprep.subr.mxu0 %v433
        %573 = vmatpush1.msra.mxu0 %v432
        %574 = vmatprep.subr.mxu0 %v435
        %575 = vmatpush1.msra.mxu0 %v434
        %576 = vmatprep.subr.mxu0 %v437
        %577 = vmatpush1.msra.mxu0 %v436
        %578 = vmatprep.subr.mxu0 %v439
        %579 = vmatpush1.msra.mxu0 %v438
        %580 = vmatprep.subr.mxu0 %v441
        %581 = vmatpush1.msra.mxu0 %v440
        %582 = vmatprep.subr.mxu0 %v443
        %583 = vmatpush1.msra.mxu0 %v442
        %584 = vmatprep.subr.mxu0 %v445
        %585 = vmatpush1.msra.mxu0 %v444
        %586 = vmatprep.subr.mxu0 %v447
        %587 = vmatpush1.msra.mxu0 %v446
        %588 = vmatprep.subr.mxu0 %v449
        %589 = vmatpush1.msra.mxu0 %v448
        %590 = vmatprep.subr.mxu0 %v451
        %591 = vmatpush1.msra.mxu0 %v450
        %592 = vmatprep.subr.mxu0 %v453
        %593 = vmatpush1.msra.mxu0 %v452
        %594 = vmatprep.subr.mxu0 %v455
        %595 = vmatpush1.msra.mxu0 %v454
        %596 = vmatprep.subr.mxu0 %v457
        %597 = vmatpush1.msra.mxu0 %v456
        %598 = vmatprep.subr.mxu0 %v459
        %599 = vmatpush1.msra.mxu0 %v458
        %600 = vmatprep.subr.mxu0 %v461
        %601 = vmatpush1.msra.mxu0 %v460
        %602 = vmatprep.subr.mxu0 %v463
        %603 = vmatpush1.msra.mxu0 %v462
        %604 = vmatprep.subr.mxu0 %v465
        %605 = vmatpush1.msra.mxu0 %v464
        %606 = vmatprep.subr.mxu0 %v467
        %607 = vmatpush1.msra.mxu0 %v466
        %608 = vmatprep.subr.mxu0 %v469
        %609 = vmatpush1.msra.mxu0 %v468
        %610 = vmatprep.mubr.f32.mxu0 %v403
        %611 = vmatmul.mubr.f32.gmra.mrb[0].mxu0 %v402
        %v612 = vpop.f32.mrb[0].mxu0
        %v613 = vadd.f32 %v539, %v612
        %v614 = vpop.f32.mrb[0].mxu0
        %v615 = vadd.f32 %v543, %v614
        %616 = vdwg.mxu0
        %617 = vmatprep.subr.mxu0 %v471
        %618 = vmatpush1.msra.mxu0 %v470
        %619 = vmatprep.subr.mxu0 %v473
        %620 = vmatpush1.msra.mxu0 %v472
        %621 = vmatprep.subr.mxu0 %v475
        %622 = vmatpush1.msra.mxu0 %v474
        %623 = vmatprep.subr.mxu0 %v477
        %624 = vmatpush1.msra.mxu0 %v476
        %625 = vmatprep.subr.mxu0 %v479
        %626 = vmatpush1.msra.mxu0 %v478
        %627 = vmatprep.subr.mxu0 %v481
        %628 = vmatpush1.msra.mxu0 %v480
        %629 = vmatprep.subr.mxu0 %v483
        %630 = vmatpush1.msra.mxu0 %v482
        %631 = vmatprep.subr.mxu0 %v485
        %632 = vmatpush1.msra.mxu0 %v484
        %633 = vmatprep.subr.mxu0 %v487
        %634 = vmatpush1.msra.mxu0 %v486
        %635 = vmatprep.subr.mxu0 %v489
        %636 = vmatpush1.msra.mxu0 %v488
        %637 = vmatprep.subr.mxu0 %v491
        %638 = vmatpush1.msra.mxu0 %v490
        %639 = vmatprep.subr.mxu0 %v493
        %640 = vmatpush1.msra.mxu0 %v492
        %641 = vmatprep.subr.mxu0 %v495
        %642 = vmatpush1.msra.mxu0 %v494
        %643 = vmatprep.subr.mxu0 %v497
        %644 = vmatpush1.msra.mxu0 %v496
        %645 = vmatprep.subr.mxu0 %v499
        %646 = vmatpush1.msra.mxu0 %v498
        %647 = vmatprep.subr.mxu0 %v501
        %648 = vmatpush1.msra.mxu0 %v500
        %649 = vmatprep.subr.mxu0 %v503
        %650 = vmatpush1.msra.mxu0 %v502
        %651 = vmatprep.subr.mxu0 %v505
        %652 = vmatpush1.msra.mxu0 %v504
        %653 = vmatprep.subr.mxu0 %v507
        %654 = vmatpush1.msra.mxu0 %v506
        %655 = vmatprep.subr.mxu0 %v509
        %656 = vmatpush1.msra.mxu0 %v508
        %657 = vmatprep.subr.mxu0 %v511
        %658 = vmatpush1.msra.mxu0 %v510
        %659 = vmatprep.subr.mxu0 %v513
        %660 = vmatpush1.msra.mxu0 %v512
        %661 = vmatprep.subr.mxu0 %v515
        %662 = vmatpush1.msra.mxu0 %v514
        %663 = vmatprep.subr.mxu0 %v517
        %664 = vmatpush1.msra.mxu0 %v516
        %665 = vmatprep.subr.mxu0 %v519
        %666 = vmatpush1.msra.mxu0 %v518
        %667 = vmatprep.subr.mxu0 %v521
        %668 = vmatpush1.msra.mxu0 %v520
        %669 = vmatprep.subr.mxu0 %v523
        %670 = vmatpush1.msra.mxu0 %v522
        %671 = vmatprep.subr.mxu0 %v525
        %672 = vmatpush1.msra.mxu0 %v524
        %673 = vmatprep.subr.mxu0 %v527
        %674 = vmatpush1.msra.mxu0 %v526
        %675 = vmatprep.subr.mxu0 %v529
        %676 = vmatpush1.msra.mxu0 %v528
        %677 = vmatprep.subr.mxu0 %v531
        %678 = vmatpush1.msra.mxu0 %v530
        %679 = vmatprep.subr.mxu0 %v533
        %680 = vmatpush1.msra.mxu0 %v532
        %681 = vmatprep.mubr.f32.mxu0 %v405
        %682 = vmatmul.mubr.f32.gmra.mrb[0].mxu0 %v404
        %v683 = vpop.f32.mrb[0].mxu0
        %v684 = vadd.f32 %v613, %v683
        %v685 = vpop.f32.mrb[0].mxu0
        %v686 = vadd.f32 %v615, %v685
        %687 = vdwg.mxu0
        %v688 = vmax.f32 %v684, 0.0
        %v689 = vmax.f32 %v686, 0.0
        %v690 = vld [vmem:[#allocation9] sm:$0xff]
        %v691 = vld [vmem:[#allocation9 + $0x8] sm:$0xff]
        %v692 = vld [vmem:[#allocation9 + $0x10] sm:$0xff]
        %v693 = vld [vmem:[#allocation9 + $0x18] sm:$0xff]
        %v694 = vld [vmem:[#allocation9 + $0x20] sm:$0xff]
        %v695 = vld [vmem:[#allocation9 + $0x28] sm:$0xff]
        %v696 = vld [vmem:[#allocation9 + $0x30] sm:$0xff]
        %v697 = vld [vmem:[#allocation9 + $0x38] sm:$0xff]
        %v698 = vld [vmem:[#allocation9 + $0x40] sm:$0xff]
        %v699 = vld [vmem:[#allocation9 + $0x48] sm:$0xff]
        %v700 = vld [vmem:[#allocation9 + $0x50] sm:$0xff]
        %v701 = vld [vmem:[#allocation9 + $0x58] sm:$0xff]
        %v702 = vld [vmem:[#allocation9 + $0x60] sm:$0xff]
        %v703 = vld [vmem:[#allocation9 + $0x68] sm:$0xff]
        %v704 = vld [vmem:[#allocation9 + $0x70] sm:$0xff]
        %v705 = vld [vmem:[#allocation9 + $0x78] sm:$0xff]
        %v706 = vld [vmem:[#allocation9 + $0x80] sm:$0xff]
        %v707 = vld [vmem:[#allocation9 + $0x88] sm:$0xff]
        %v708 = vld [vmem:[#allocation9 + $0x90] sm:$0xff]
        %v709 = vld [vmem:[#allocation9 + $0x98] sm:$0xff]
        %v710 = vld [vmem:[#allocation9 + $0xa0] sm:$0xff]
        %v711 = vld [vmem:[#allocation9 + $0xa8] sm:$0xff]
        %v712 = vld [vmem:[#allocation9 + $0xb0] sm:$0xff]
        %v713 = vld [vmem:[#allocation9 + $0xb8] sm:$0xff]
        %v714 = vld [vmem:[#allocation9 + $0xc0] sm:$0xff]
        %v715 = vld [vmem:[#allocation9 + $0xc8] sm:$0xff]
        %v716 = vld [vmem:[#allocation9 + $0xd0] sm:$0xff]
        %v717 = vld [vmem:[#allocation9 + $0xd8] sm:$0xff]
        %v718 = vld [vmem:[#allocation9 + $0xe0] sm:$0xff]
        %v719 = vld [vmem:[#allocation9 + $0xe8] sm:$0xff]
        %v720 = vld [vmem:[#allocation9 + $0xf0] sm:$0xff]
        %v721 = vld [vmem:[#allocation9 + $0xf8] sm:$0xff]
        %v722 = vld [vmem:[#allocation11] sm:$0x1]
        %v724 = vlaneseq
        %v725 = vshrl.u32 %v724, 7
        %v726 = vsub.s32 0, %v725
        %v727 = vrot.slane %v722, %v726
        %729 = vmatprep.subr.mxu0 0.0
        %730 = vmatpush1.msra.mxu0 %v690
        %731 = vmatprep.subr.mxu0 0.0
        %732 = vmatpush1.msra.mxu0 %v691
        %733 = vmatprep.subr.mxu0 0.0
        %734 = vmatpush1.msra.mxu0 %v692
        %735 = vmatprep.subr.mxu0 0.0
        %736 = vmatpush1.msra.mxu0 %v693
        %737 = vmatprep.subr.mxu0 0.0
        %738 = vmatpush1.msra.mxu0 %v694
        %739 = vmatprep.subr.mxu0 0.0
        %740 = vmatpush1.msra.mxu0 %v695
        %741 = vmatprep.subr.mxu0 0.0
        %742 = vmatpush1.msra.mxu0 %v696
        %743 = vmatprep.subr.mxu0 0.0
        %744 = vmatpush1.msra.mxu0 %v697
        %745 = vmatprep.subr.mxu0 0.0
        %746 = vmatpush1.msra.mxu0 %v698
        %747 = vmatprep.subr.mxu0 0.0
        %748 = vmatpush1.msra.mxu0 %v699
        %749 = vmatprep.subr.mxu0 0.0
        %750 = vmatpush1.msra.mxu0 %v700
        %751 = vmatprep.subr.mxu0 0.0
        %752 = vmatpush1.msra.mxu0 %v701
        %753 = vmatprep.subr.mxu0 0.0
        %754 = vmatpush1.msra.mxu0 %v702
        %755 = vmatprep.subr.mxu0 0.0
        %756 = vmatpush1.msra.mxu0 %v703
        %757 = vmatprep.subr.mxu0 0.0
        %758 = vmatpush1.msra.mxu0 %v704
        %759 = vmatprep.subr.mxu0 0.0
        %760 = vmatpush1.msra.mxu0 %v705
        %761 = vmatprep.subr.mxu0 0.0
        %762 = vmatpush1.msra.mxu0 %v706
        %763 = vmatprep.subr.mxu0 0.0
        %764 = vmatpush1.msra.mxu0 %v707
        %765 = vmatprep.subr.mxu0 0.0
        %766 = vmatpush1.msra.mxu0 %v708
        %767 = vmatprep.subr.mxu0 0.0
        %768 = vmatpush1.msra.mxu0 %v709
        %769 = vmatprep.subr.mxu0 0.0
        %770 = vmatpush1.msra.mxu0 %v710
        %771 = vmatprep.subr.mxu0 0.0
        %772 = vmatpush1.msra.mxu0 %v711
        %773 = vmatprep.subr.mxu0 0.0
        %774 = vmatpush1.msra.mxu0 %v712
        %775 = vmatprep.subr.mxu0 0.0
        %776 = vmatpush1.msra.mxu0 %v713
        %777 = vmatprep.subr.mxu0 0.0
        %778 = vmatpush1.msra.mxu0 %v714
        %779 = vmatprep.subr.mxu0 0.0
        %780 = vmatpush1.msra.mxu0 %v715
        %781 = vmatprep.subr.mxu0 0.0
        %782 = vmatpush1.msra.mxu0 %v716
        %783 = vmatprep.subr.mxu0 0.0
        %784 = vmatpush1.msra.mxu0 %v717
        %785 = vmatprep.subr.mxu0 0.0
        %786 = vmatpush1.msra.mxu0 %v718
        %787 = vmatprep.subr.mxu0 0.0
        %788 = vmatpush1.msra.mxu0 %v719
        %789 = vmatprep.subr.mxu0 0.0
        %790 = vmatpush1.msra.mxu0 %v720
        %791 = vmatprep.subr.mxu0 0.0
        %792 = vmatpush1.msra.mxu0 %v721
        %793 = vmatprep.mubr.f32.mxu0 %v689
        %794 = vmatmul.mubr.f32.gmra.mrb[0].mxu0 %v688
        %v795 = vpop.f32.mrb[0].mxu0
        %v796 = vadd.f32 %v727, %v795
        %v797 = vpop.f32.mrb[0].mxu0
        %798 = vdwg.mxu0
        %v799 = vmul.f32 %v796, %v796
        %800 = vadd.xlane.f32.xlu0 %v799
        %v801 = vpop.xlane.xlu0 %800
        %v802 = vmax.f32 %v801, 1e-24
        %v803 = vrsqrt.pop %v802
        %v804 = vmul.f32 %v796, %v803
        %v805 = vld [vmem:[#allocation12] sm:$0x1]
        %v807 = vlaneseq
        %v808 = vshrl.u32 %v807, 7
        %v809 = vsub.s32 0, %v808
        %v810 = vrot.slane %v805, %v809
        %v812 = vmul.f32 %v796, %v810
        %813 = vadd.xlane.f32.xlu0 %v812
        %v814 = vpop.xlane.xlu0 %813
        %v815 = vmul.f32 %v814, %v803
        %v816 = vld [vmem:[#allocation2] sm:$0x1]
        %v818 = vlaneseq
        %v819 = vshrl.u32 %v818, 7
        %v820 = vsub.s32 0, %v819
        %v821 = vrot.slane %v816, %v820
        %v823 = vadd.f32 %v815, %v821
        %v824 = vxor.u32 %v823, 2147483648
        %v825 = vmul.f32 %v824, 1.442695
        %v826 = vpow.pop %v825
        %v827 = vadd.f32 %v826, 1.0
        %v828 = vrcp.pop %v827
        %v829 = vmul.f32 1.0, %v828
        %830 = vst [vmem:[%s394] sm:$0xff] %v804
        %vm831 = vcmask 7168
        %832 = vst.msk [vmem:[%s401] sm:$0xff] %vm831, %v829
        %s833 = sand.u32 %s194, 1
        %s834 = scalar_lea.sflag [#allocation5], %s833
        %s835 = sand.u32 %s194, 1
        %s836 = smul.addr %s835, 8
        %s837 = scalar_lea.vmem [#allocation14], %s836
        %s838 = sand.u32 %s220, 1
        %s839 = scalar_lea.sflag [#allocation16], %s838
        %s840 = sand.u32 %s220, 1
        %s841 = smul.addr %s840, 8
        %s842 = scalar_lea.vmem [#allocation15], %s841
        // Predicated region
        $region73: #{tpu_custom_call.1} parent=47 // pred_check
          %p843 = pneg %p204
        $region74: #{tpu_custom_call.1} parent=47 // pred_check_branch
          %845 = sbr.rel (%p843) target = $region76
        $region75: #{tpu_custom_call.1} parent=47 // pred_region
          %s847 = ssub.s32 128, 128
          %848 = vsyncadd %s834, %s847
          %s849 = smul.addr %s34, 128
          %s850 = scalar_lea.hbm %s7, %s849
          %s852 = sshll.u32 %s837, 4
          %s853 = int_to_ptr.vmem [resolvable:$true] %s852
          %855 = dma.vmem_to_hbm [thread:$0]  %s853, 128, %s850, %s834
        $region76: #{tpu_custom_call.1} parent=47 // pred_fallthru
          _
        // Predicated region
        $region77: #{tpu_custom_call.1} parent=47 // pred_check
          %p856 = pneg %p230
        $region78: #{tpu_custom_call.1} parent=47 // pred_check_branch
          %858 = sbr.rel (%p856) target = $region80
        $region79: #{tpu_custom_call.1} parent=47 // pred_region
          %s860 = ssub.s32 128, 128
          %861 = vsyncadd %s839, %s860
          %s862 = smul.addr %s34, 128
          %s863 = scalar_lea.hbm %s8, %s862
          %s865 = sshll.u32 %s842, 4
          %s866 = int_to_ptr.vmem [resolvable:$true] %s865
          %868 = dma.vmem_to_hbm [thread:$0]  %s866, 128, %s863, %s839
        $region80: #{tpu_custom_call.1} parent=47 // pred_fallthru
          _
      $region48: #{tpu_custom_call.1} parent=5 // pred_fallthru
        _
      %p869 = scmp.le.s32.totalorder 2, %s29
      // Predicated region
      $region81: #{tpu_custom_call.1} parent=5 // pred_check
        %p870 = pneg %p869
      $region82: #{tpu_custom_call.1} parent=5 // pred_check_branch
        %872 = sbr.rel (%p870) target = $region84
      $region83: #{tpu_custom_call.1} parent=5 // pred_region
        %s873 = ssub.s32 %s29, 2
        // Predicated region
        $region85: #{tpu_custom_call.1} parent=83 // pred_check
          %p874 = pneg %p210
        $region86: #{tpu_custom_call.1} parent=83 // pred_check_branch
          %876 = sbr.rel (%p874) target = $region88
        $region87: #{tpu_custom_call.1} parent=83 // pred_region
          %s877 = sand.u32 %s195, 1
          %s878 = scalar_lea.sflag [#allocation5], %s877
          %s879 = sand.u32 %s195, 1
          %s880 = smul.addr %s879, 8
          %s881 = scalar_lea.vmem [#allocation14], %s880
          %882 = dma.done %s878, 128
        $region88: #{tpu_custom_call.1} parent=83 // pred_fallthru
          _
        // Predicated region
        $region89: #{tpu_custom_call.1} parent=83 // pred_check
          %p883 = pneg %p236
        $region90: #{tpu_custom_call.1} parent=83 // pred_check_branch
          %885 = sbr.rel (%p883) target = $region92
        $region91: #{tpu_custom_call.1} parent=83 // pred_region
          %s886 = sand.u32 %s221, 1
          %s887 = scalar_lea.sflag [#allocation16], %s886
          %s888 = sand.u32 %s221, 1
          %s889 = smul.addr %s888, 8
          %s890 = scalar_lea.vmem [#allocation15], %s889
          %891 = dma.done %s887, 128
        $region92: #{tpu_custom_call.1} parent=83 // pred_fallthru
          _
      $region84: #{tpu_custom_call.1} parent=5 // pred_fallthru
        _
    $region6: #{tpu_custom_call.1} parent=1 // loop_footer
      %s33 = sadd.s32 1, %s29
    $region7: #{tpu_custom_call.1} parent=1 // loop_footer_branch
      %28 = sbr.rel target = $region3
    $region8: #{tpu_custom_call.1} parent=1 // loop_exit
      _
    %892 = vsyncpa [#allocation4], 1
    %s893 = scalar_lea.sflag [#allocation4], 1
    %894 = vsyncpa %s893, 1
    %895 = vsyncpa [#allocation7], 1
    %896 = vsyncpa [#allocation10], 1
    %897 = vsyncpa [#allocation13], 1
    %898 = vsyncpa [#allocation5], 1
    %s899 = scalar_lea.sflag [#allocation5], 1
    %900 = vsyncpa %s899, 1
    %901 = vsyncpa [#allocation16], 1
    %s902 = scalar_lea.sflag [#allocation16], 1
    %903 = vsyncpa %s902, 1

</llo_original>
